<compile_context>
chip_gen: v7x
topology: tpu7x:2x2x1
jax: 0.10.0
libtpu: 0.0.40
codegen_flags: <defaults>
</compile_context>

<pallas_src>
import jax
import jax.numpy as jnp
from jax.experimental import pallas as pl
from jax.experimental.pallas import tpu as pltpu


def _round_up(x, m):
    return (x + m - 1) // m * m


# ---------------------------------------------------------------------------
# Pallas kernel: one (batch-block x entity-tile) block of the score matrix
# ---------------------------------------------------------------------------
def _score_kernel(q_ref, ent_ref, out_ref):
    # q_ref   : [TB, D]  bf16   (precomputed e1_emb * r_emb query rows)
    # ent_ref : [D, TN]  bf16   (pre-transposed entity tile -> native MXU RHS)
    # out_ref : [TB, TN] out_dtype (bf16 by default), f32 accumulation on MXU
    out_ref[...] = jnp.dot(
        q_ref[...], ent_ref[...], preferred_element_type=jnp.float32
    ).astype(out_ref.dtype)


def predict_scores(q, entity_emb_t, num_entities, tile_n, *,
                   out_dtype=jnp.bfloat16,
                   vmem_budget_bytes=24 * 1024 * 1024,
                   vmem_limit_bytes=32 * 1024 * 1024):
    """scores[b, n] = sum_d q[b, d] * E[n, d]  (f32 accumulation, bf16 out).

    `entity_emb_t` is the once-at-init padded transpose [D, Np] of the entity
    table (Np a multiple of `tile_n`).  If the whole query block fits VMEM the
    grid is 1-D over entity tiles and q is fetched once; otherwise a 2-D
    (entity-outer, batch-inner) grid is used.
    """
    B, D = q.shape
    d2, Np = entity_emb_t.shape
    assert d2 == D and Np % tile_n == 0
    tn = tile_n
    out_itemsize = jnp.dtype(out_dtype).itemsize
    ent_tile_bytes = 2 * D * tn * 2                       # double-buffered bf16

    # ---- resident-q path: q DMA'd exactly once -----------------------------
    bp_res = _round_up(max(B, 16), 16)
    resident_bytes = (2 * bp_res * D * 2                  # q (counted x2, safe)
                      + ent_tile_bytes
                      + 2 * bp_res * tn * out_itemsize)   # output stripe

    if resident_bytes <= vmem_budget_bytes:
        tb = Bp = bp_res
        grid = (Np // tn,)
        in_specs = [
            pl.BlockSpec((tb, D), lambda j: (0, 0)),      # constant -> 1 fetch
            pl.BlockSpec((D, tn), lambda j: (0, j)),
        ]
        out_specs = pl.BlockSpec((tb, tn), lambda j: (0, j))
        dims = ("parallel",)                              # split over entities
    else:
        # ---- 2-D fallback: entity tiles outer, batch tiles inner -----------
        tb_max = (vmem_budget_bytes - ent_tile_bytes) // (4 * D + 2 * tn * out_itemsize)
        if tb_max >= 128:
            tb = min(1024, (tb_max // 128) * 128)         # 128-aligned for MXU
        else:
            tb = max(16, (tb_max // 16) * 16)
        Bp = _round_up(max(B, tb), tb)
        grid = (Np // tn, Bp // tb)
        in_specs = [
            pl.BlockSpec((tb, D), lambda j, i: (i, 0)),
            pl.BlockSpec((D, tn), lambda j, i: (0, j)),   # reused across batch
        ]
        out_specs = pl.BlockSpec((tb, tn), lambda j, i: (i, j))
        # entity axis parallel only: a megacore split lands on entities so each
        # core streams half the table once (batch split would double HBM reads)
        dims = ("parallel", "arbitrary")

    if Bp != B:
        q = jnp.pad(q, ((0, Bp - B), (0, 0)))

    cost = pl.CostEstimate(
        flops=2 * Bp * Np * D,
        transcendentals=0,
        bytes_accessed=D * Np * 2 + Bp * D * 2 + Bp * Np * out_itemsize,
    )

    out = pl.pallas_call(
        _score_kernel,
        out_shape=jax.ShapeDtypeStruct((Bp, Np), out_dtype),
        grid_spec=pltpu.PrefetchScalarGridSpec(
            num_scalar_prefetch=0,
            grid=grid,
            in_specs=in_specs,
            out_specs=out_specs,
        ),
        compiler_params=pltpu.CompilerParams(
            dimension_semantics=dims,
            vmem_limit_bytes=vmem_limit_bytes,
        ),
        cost_estimate=cost,
    )(q, entity_emb_t)

    if Bp != B or Np != num_entities:
        out = out[:B, :num_entities]
    return out


# ---------------------------------------------------------------------------
# LFramework-equivalent (forward pass only)
# ---------------------------------------------------------------------------
class LFrameworkJAX:
    def __init__(self, num_entities, num_relations, emb_dim, batch_size,
                 dummy_e=0, dummy_r=0, seed=0, score_dtype=jnp.bfloat16):
        self.batch_size = batch_size
        self.dummy_e = dummy_e
        self.dummy_r = dummy_r
        self.num_entities = num_entities
        self.score_dtype = score_dtype
        k1, k2 = jax.random.split(jax.random.PRNGKey(seed))
        # kg embeddings (deterministic synthetic parameters), stored in bf16:
        # halves HBM bytes for the memory-bound entity stream; f32 accumulation
        # stays inside the kernel.
        self.entity_emb = (jax.random.normal(k1, (num_entities, emb_dim),
                                             dtype=jnp.float32) * 0.1
                           ).astype(jnp.bfloat16)
        self.relation_emb = (jax.random.normal(k2, (num_relations, emb_dim),
                                               dtype=jnp.float32) * 0.1
                             ).astype(jnp.bfloat16)

        # Entity tile: up to 2048 lanes, shrunk so the double-buffered bf16
        # tile stays <= 4 MiB even for very large emb_dim.
        tn = min(2048, _round_up(num_entities, 128))
        while tn > 128 and 2 * emb_dim * tn * 2 > 4 * 1024 * 1024:
            tn //= 2
        self._tile_n = tn

        # Pad + transpose the entity table ONCE (no per-call jnp.pad, and the
        # kernel's RHS is already [K, N] so the MXU never needs a transpose).
        np_pad = _round_up(num_entities, tn)
        ent = self.entity_emb
        if np_pad != num_entities:
            ent = jnp.pad(ent, ((0, np_pad - num_entities), (0, 0)))
        self.entity_emb_t = jnp.asarray(jnp.transpose(ent))   # [D, Np] bf16

        print('point.rs module created')

    # --- format_batch (glue: build index tensors from triples) -------------
    def format_batch(self, batch_data):
        batch_e1 = jnp.asarray([ex[0] for ex in batch_data], dtype=jnp.int32)
        batch_r = jnp.asarray([ex[2] for ex in batch_data], dtype=jnp.int32)
        return batch_e1, batch_r

    # --- make_full_batch (kept for API fidelity; forward no longer needs it)
    def make_full_batch(self, mini_batch, batch_size):
        dummy_example = (self.dummy_e, self.dummy_e, self.dummy_r)
        for _ in range(batch_size - len(mini_batch)):
            mini_batch.append(dummy_example)

    # --- query construction: gather + elementwise product (done ONCE) ------
    def _make_queries(self, e1, r):
        e1_emb = self.entity_emb[e1].astype(jnp.float32)   # [B, D]
        r_emb = self.relation_emb[r].astype(jnp.float32)   # [B, D]
        return (e1_emb * r_emb).astype(jnp.bfloat16)

    # --- predict: single-mini-batch path (API fidelity) ---------------------
    def predict(self, mini_batch, verbose=False):
        e1, r = self.format_batch(mini_batch)
        q = self._make_queries(e1, r)
        return predict_scores(q, self.entity_emb_t, self.num_entities,
                              self._tile_n, out_dtype=self.score_dtype)

    # --- forward: mirrors LFramework.forward, fused into ONE pallas_call ----
    def forward(self, examples, verbose=False):
        # Same output as the original per-mini-batch loop (dummy-pad each
        # partial batch, score, trim, concatenate): the dummy rows were always
        # trimmed, so we simply stack the REAL queries, score them in one fused
        # Pallas call (entity table streamed from HBM once), and skip the
        # keep_rows gather -- which was an extra full pass over the B x N
        # score matrix in HBM.
        e1_idx = [ex[0] for ex in examples]
        r_idx = [ex[2] for ex in examples]
        e1 = jnp.asarray(e1_idx, dtype=jnp.int32)
        r = jnp.asarray(r_idx, dtype=jnp.int32)
        q = self._make_queries(e1, r)                      # [B_total, D] bf16
        scores = predict_scores(q, self.entity_emb_t, self.num_entities,
                                self._tile_n, out_dtype=self.score_dtype)
        return scores

    # TODO(synk): run_train / save_checkpoint / load_checkpoint /
    # export_to_embedding_projector are host-side training-loop & file I/O
    # logic with no Pallas equivalent; omitted.


if __name__ == "__main__":
    NUM_ENTITIES = 256
    NUM_RELATIONS = 16
    EMB_DIM = 128
    BATCH_SIZE = 8

    framework = LFrameworkJAX(NUM_ENTITIES, NUM_RELATIONS, EMB_DIM, BATCH_SIZE,
                              seed=0)

    # Deterministic synthetic (e1, e2, r) triples; last batch is partial so the
    # (now collapsed) padding/trimming path of forward() is exercised.
    key = jax.random.PRNGKey(0)
    ke1, ke2, kr = jax.random.split(key, 3)
    n_examples = 20
    e1s = jax.random.randint(ke1, (n_examples,), 0, NUM_ENTITIES)
    e2s = jax.random.randint(ke2, (n_examples,), 0, NUM_ENTITIES)
    rs = jax.random.randint(kr, (n_examples,), 0, NUM_RELATIONS)
    examples = [(int(e1s[i]), int(e2s[i]), int(rs[i])) for i in range(n_examples)]

    scores = framework.forward(examples, verbose=False)
    scores = jax.block_until_ready(scores)

    # Pure-JAX reference check of the kernel math (same bf16 query / bf16
    # entity table, f32 accumulation; kernel output is bf16 -> looser tol).
    e1_idx = jnp.asarray([ex[0] for ex in examples], dtype=jnp.int32)
    r_idx = jnp.asarray([ex[2] for ex in examples], dtype=jnp.int32)
    q_ref = (framework.entity_emb[e1_idx].astype(jnp.float32)
             * framework.relation_emb[r_idx].astype(jnp.float32)
             ).astype(jnp.bfloat16)
    ref = jax.lax.dot_general(
        q_ref.astype(jnp.float32),
        framework.entity_emb.astype(jnp.float32),
        dimension_numbers=(((1,), (1,)), ((), ())),
    )
    assert scores.shape == (n_examples, NUM_ENTITIES)
    assert scores.dtype == jnp.bfloat16
    assert jnp.allclose(scores.astype(jnp.float32), ref, atol=1e-3, rtol=2e-2)

    print("KERNEL_OK")
</pallas_src>

<mosaic_0001>
module attributes {stable_mosaic.version = 11 : i64} {
  func.func @_score_kernel(%arg0: i32, %arg1: memref<32x128xbf16, #tpu.memory_space<vmem>>, %arg2: memref<128x256xbf16, #tpu.memory_space<vmem>>, %arg3: memref<32x256xbf16, #tpu.memory_space<vmem>>) attributes {dimension_semantics = [#tpu.dimension_semantics<parallel>], iteration_bounds = array<i64: 1>, scalar_prefetch = 0 : i64, scratch_operands = 0 : i64, tpu.core_type = #tpu.core_type<tc>, window_params = [{pipeline_mode = #tpu.pipeline_mode<synchronous>, transform_indices = @transform_0, window_bounds = array<i64: 32, 128>}, {transform_indices = @transform_1, window_bounds = array<i64: 128, 256>}, {transform_indices = @transform_2, window_bounds = array<i64: 32, 256>}]} {
    %c0 = arith.constant 0 : index
    %c0_0 = arith.constant 0 : index
    %0 = vector.load %arg1[%c0, %c0_0] : memref<32x128xbf16, #tpu.memory_space<vmem>>, vector<32x128xbf16>
    %c0_1 = arith.constant 0 : index
    %c0_2 = arith.constant 0 : index
    %1 = vector.load %arg2[%c0_1, %c0_2] : memref<128x256xbf16, #tpu.memory_space<vmem>>, vector<128x256xbf16>
    %cst = arith.constant dense<0.000000e+00> : vector<32x256xf32>
    %2 = tpu.matmul %0, %1, %cst {dimension_numbers = #tpu.dot_dimension_numbers<[1], [0], [0], [1], [0, 0, 1, 1], [], []>} : vector<32x128xbf16>, vector<128x256xbf16>, vector<32x256xf32> -> vector<32x256xf32>
    %3 = arith.truncf %2 : vector<32x256xf32> to vector<32x256xbf16>
    %c0_3 = arith.constant 0 : index
    %c0_4 = arith.constant 0 : index
    %4 = vector.load %arg3[%c0_3, %c0_4] : memref<32x256xbf16, #tpu.memory_space<vmem>>, vector<32x256xbf16>
    tpu.vector_store %arg3[%c0_3, %c0_4], %3 {strides = array<i32>} : memref<32x256xbf16, #tpu.memory_space<vmem>>, vector<32x256xbf16>,
    return
  }
  func.func @transform_0(%arg0: i32) -> (i32, i32) {
    %c0_i32 = arith.constant 0 : i32
    %c0_i32_0 = arith.constant 0 : i32
    %c0_i32_1 = arith.constant 0 : i32
    return %c0_i32, %c0_i32_0 : i32, i32
  }
  func.func @transform_1(%arg0: i32) -> (i32, i32) {
    %c0_i32 = arith.constant 0 : i32
    %c0_i32_0 = arith.constant 0 : i32
    return %c0_i32, %arg0 : i32, i32
  }
  func.func @transform_2(%arg0: i32) -> (i32, i32) {
    %c0_i32 = arith.constant 0 : i32
    %c0_i32_0 = arith.constant 0 : i32
    return %c0_i32, %arg0 : i32, i32
  }
}

</mosaic_0001>

<llo_original>
// kernel: tpu_custom_call.1
$region0: #{tpu_custom_call.1}
  #allocation0 [shape = 'u32[]', space=smem, size = 0x4, offset = 0x4, fixed_abs, tag = 'smem constant byte address 0x4 - core index']
  #allocation1 [shape = 'u32[144,128]{1,0:T(1,128)}', space=vmem, size = 0x12000, scoped, tag = 'internal scratch']
  %s0 = inlined_call_operand.hbm [shape: bf16[32,128], index: 0, kind: input, shape index: {}]
  %s1 = inlined_call_operand.hbm [shape: bf16[128,256], index: 1, kind: input, shape index: {}]
  %s2 = inlined_call_operand.hbm [shape: bf16[32,256], index: 2, kind: output, shape index: {}]
  %s3 = sld [smem:[#allocation0]]
  $region26: #{tpu_custom_call.1} parent=0
    _
  %s5 = ssub.s32 1, %s3
  %s6 = scalar_select 0, %s5, %s3
  $region1: #{tpu_custom_call.1} parent=0
    #allocation2 [shape = 'u8[8192]{0}', space=vmem, size = 0x2000, scoped, tag = 'input window, operand 0, single buffered']
    #allocation3 [shape = 's32[1]{0}', space=sflag, size = 0x4, scoped, tag = 'scoped memory for tpu_custom_call.1']
    #allocation4 [shape = 's32[1]{0}', space=sflag, size = 0x4, scoped, tag = 'scoped memory for tpu_custom_call.1']
    #allocation5 [shape = 'u8[65536]{0}', space=vmem, size = 0x10000, scoped, tag = 'input window, operand 1, single buffered']
    #allocation6 [shape = 's32[1]{0}', space=sflag, size = 0x4, scoped, tag = 'scoped memory for tpu_custom_call.1']
    #allocation7 [shape = 'u8[16384]{0}', space=vmem, size = 0x4000, scoped, tag = 'output window, operand 0, single buffered']
    %7 = vsyncpa [#allocation3], 0
    %8 = vsyncpa [#allocation6], 0
    %9 = vsyncpa [#allocation4], 0
    // Predicated region
    $region2: #{tpu_custom_call.1} parent=1 // pred_check
      _
    $region3: #{tpu_custom_call.1} parent=1 // pred_check_branch
      %11 = sbr.rel (0) target = $region5
    $region4: #{tpu_custom_call.1} parent=1 // pred_region
      %s13 = ssub.s32 256, 256
      %14 = vsyncadd [#allocation3], %s13
      %s15 = sshll.u32 [#allocation2], 4
      %s16 = int_to_ptr.vmem [resolvable:$true] %s15
      %21 = dma.hbm_to_vmem [thread:$0]  %s0, 256, %s16, [#allocation3], 64, 64, 4
    $region5: #{tpu_custom_call.1} parent=1 // pred_fallthru
      _
    // Predicated region
    $region6: #{tpu_custom_call.1} parent=1 // pred_check
      _
    $region7: #{tpu_custom_call.1} parent=1 // pred_check_branch
      %23 = sbr.rel (0) target = $region9
    $region8: #{tpu_custom_call.1} parent=1 // pred_region
      %s25 = ssub.s32 2048, 2048
      %26 = vsyncadd [#allocation6], %s25
      %s27 = sshll.u32 [#allocation5], 4
      %s28 = int_to_ptr.vmem [resolvable:$true] %s27
      %33 = dma.hbm_to_vmem [thread:$0]  %s1, 2048, %s28, [#allocation6], 128, 128, 8
    $region9: #{tpu_custom_call.1} parent=1 // pred_fallthru
      _
    // Predicated region
    $region10: #{tpu_custom_call.1} parent=1 // pred_check
      _
    $region11: #{tpu_custom_call.1} parent=1 // pred_check_branch
      %35 = sbr.rel (0) target = $region13
    $region12: #{tpu_custom_call.1} parent=1 // pred_region
      %36 = dma.done [#allocation3], 256
    $region13: #{tpu_custom_call.1} parent=1 // pred_fallthru
      _
    // Predicated region
    $region14: #{tpu_custom_call.1} parent=1 // pred_check
      _
    $region15: #{tpu_custom_call.1} parent=1 // pred_check_branch
      %38 = sbr.rel (0) target = $region17
    $region16: #{tpu_custom_call.1} parent=1 // pred_region
      %39 = dma.done [#allocation6], 2048
    $region17: #{tpu_custom_call.1} parent=1 // pred_fallthru
      _
    %v41 = vld [vmem:[#allocation2] sm:$0xf]
    %v42 = vld [vmem:[#allocation2 + $0x4] sm:$0xf]
    %v43 = vld [vmem:[#allocation2 + $0x8] sm:$0xf]
    %v44 = vld [vmem:[#allocation2 + $0xc] sm:$0xf]
    %v45 = vld [vmem:[#allocation5] sm:$0xff]
    %v46 = vld [vmem:[#allocation5 + $0x8] sm:$0xff]
    %v47 = vld [vmem:[#allocation5 + $0x10] sm:$0xff]
    %v48 = vld [vmem:[#allocation5 + $0x18] sm:$0xff]
    %v49 = vld [vmem:[#allocation5 + $0x20] sm:$0xff]
    %v50 = vld [vmem:[#allocation5 + $0x28] sm:$0xff]
    %v51 = vld [vmem:[#allocation5 + $0x30] sm:$0xff]
    %v52 = vld [vmem:[#allocation5 + $0x38] sm:$0xff]
    %v53 = vld [vmem:[#allocation5 + $0x40] sm:$0xff]
    %v54 = vld [vmem:[#allocation5 + $0x48] sm:$0xff]
    %v55 = vld [vmem:[#allocation5 + $0x50] sm:$0xff]
    %v56 = vld [vmem:[#allocation5 + $0x58] sm:$0xff]
    %v57 = vld [vmem:[#allocation5 + $0x60] sm:$0xff]
    %v58 = vld [vmem:[#allocation5 + $0x68] sm:$0xff]
    %v59 = vld [vmem:[#allocation5 + $0x70] sm:$0xff]
    %v60 = vld [vmem:[#allocation5 + $0x78] sm:$0xff]
    %v65 = vunpack.c.l.b16 %v41
    %v66 = vunpack.c.l.b16 %v42
    %v67 = vunpack.c.l.b16 %v43
    %v68 = vunpack.c.l.b16 %v44
    %v69 = vpack.c.b16 %v66, %v65
    %v70 = vpack.c.b16 %v68, %v67
    %v89 = vunpack.c.l.b16 %v45
    %v90 = vunpack.c.h.b16 %v45
    %v91 = vunpack.c.l.b16 %v46
    %v92 = vunpack.c.h.b16 %v46
    %v93 = vunpack.c.l.b16 %v47
    %v94 = vunpack.c.h.b16 %v47
    %v95 = vunpack.c.l.b16 %v48
    %v96 = vunpack.c.h.b16 %v48
    %v97 = vunpack.c.l.b16 %v49
    %v98 = vunpack.c.h.b16 %v49
    %v99 = vunpack.c.l.b16 %v50
    %v100 = vunpack.c.h.b16 %v50
    %v101 = vunpack.c.l.b16 %v51
    %v102 = vunpack.c.h.b16 %v51
    %v103 = vunpack.c.l.b16 %v52
    %v104 = vunpack.c.h.b16 %v52
    %v105 = vunpack.c.l.b16 %v53
    %v106 = vunpack.c.h.b16 %v53
    %v107 = vunpack.c.l.b16 %v54
    %v108 = vunpack.c.h.b16 %v54
    %v109 = vunpack.c.l.b16 %v55
    %v110 = vunpack.c.h.b16 %v55
    %v111 = vunpack.c.l.b16 %v56
    %v112 = vunpack.c.h.b16 %v56
    %v113 = vunpack.c.l.b16 %v57
    %v114 = vunpack.c.h.b16 %v57
    %v115 = vunpack.c.l.b16 %v58
    %v116 = vunpack.c.h.b16 %v58
    %v117 = vunpack.c.l.b16 %v59
    %v118 = vunpack.c.h.b16 %v59
    %v119 = vunpack.c.l.b16 %v60
    %v120 = vunpack.c.h.b16 %v60
    %v121 = vpack.c.b16 %v91, %v89
    %v122 = vpack.c.b16 %v92, %v90
    %v123 = vpack.c.b16 %v95, %v93
    %v124 = vpack.c.b16 %v96, %v94
    %v125 = vpack.c.b16 %v99, %v97
    %v126 = vpack.c.b16 %v100, %v98
    %v127 = vpack.c.b16 %v103, %v101
    %v128 = vpack.c.b16 %v104, %v102
    %v129 = vpack.c.b16 %v107, %v105
    %v130 = vpack.c.b16 %v108, %v106
    %v131 = vpack.c.b16 %v111, %v109
    %v132 = vpack.c.b16 %v112, %v110
    %v133 = vpack.c.b16 %v115, %v113
    %v134 = vpack.c.b16 %v116, %v114
    %v135 = vpack.c.b16 %v119, %v117
    %v136 = vpack.c.b16 %v120, %v118
    %153 = vmatprep.subr.bf16.mxu0 %v122
    %154 = vmatpush1.bf16.msra.mxu0 %v121
    %155 = vmatprep.subr.bf16.mxu0 %v124
    %156 = vmatpush1.bf16.msra.mxu0 %v123
    %157 = vmatprep.subr.bf16.mxu0 %v126
    %158 = vmatpush1.bf16.msra.mxu0 %v125
    %159 = vmatprep.subr.bf16.mxu0 %v128
    %160 = vmatpush1.bf16.msra.mxu0 %v127
    %161 = vmatprep.subr.bf16.mxu0 %v130
    %162 = vmatpush1.bf16.msra.mxu0 %v129
    %163 = vmatprep.subr.bf16.mxu0 %v132
    %164 = vmatpush1.bf16.msra.mxu0 %v131
    %165 = vmatprep.subr.bf16.mxu0 %v134
    %166 = vmatpush1.bf16.msra.mxu0 %v133
    %167 = vmatprep.subr.bf16.mxu0 %v136
    %168 = vmatpush1.bf16.msra.mxu0 %v135
    %169 = vmatprep.subr.bf16.mxu0 0
    %170 = vmatpush1.bf16.msra.mxu0 0
    %171 = vmatprep.subr.bf16.mxu0 0
    %172 = vmatpush1.bf16.msra.mxu0 0
    %173 = vmatprep.subr.bf16.mxu0 0
    %174 = vmatpush1.bf16.msra.mxu0 0
    %175 = vmatprep.subr.bf16.mxu0 0
    %176 = vmatpush1.bf16.msra.mxu0 0
    %177 = vmatprep.subr.bf16.mxu0 0
    %178 = vmatpush1.bf16.msra.mxu0 0
    %179 = vmatprep.subr.bf16.mxu0 0
    %180 = vmatpush1.bf16.msra.mxu0 0
    %181 = vmatprep.subr.bf16.mxu0 0
    %182 = vmatpush1.bf16.msra.mxu0 0
    %183 = vmatprep.subr.bf16.mxu0 0
    %184 = vmatpush1.bf16.msra.mxu0 0
    %185 = vmatprep.mubr.bf16.mxu0 0
    %186 = vmatmul.mubr.bf16.gmra.mrb[0].mxu0 %v69
    %v187 = vpop.f32.mrb[0].mxu0
    %v188 = vadd.f32 0.0, %v187
    %v189 = vpop.f32.mrb[0].mxu0
    %v190 = vadd.f32 0.0, %v189
    %v191 = vpop.f32.mrb[0].mxu0
    %v192 = vadd.f32 0.0, %v191
    %v193 = vpop.f32.mrb[0].mxu0
    %v194 = vadd.f32 0.0, %v193
    %195 = vmatprep.mubr.bf16.mxu0 0
    %196 = vmatmul.mubr.bf16.gmra.mrb[0].mxu0 %v70
    %v197 = vpop.f32.mrb[0].mxu0
    %v198 = vadd.f32 0.0, %v197
    %v199 = vpop.f32.mrb[0].mxu0
    %v200 = vadd.f32 0.0, %v199
    %v201 = vpop.f32.mrb[0].mxu0
    %v202 = vadd.f32 0.0, %v201
    %v203 = vpop.f32.mrb[0].mxu0
    %v204 = vadd.f32 0.0, %v203
    %205 = vdwg.mxu0
    %v206 = vpack.c.bf16 %v192, %v188
    %v207 = vpack.c.bf16 %v194, %v190
    %v208 = vpack.c.bf16 %v202, %v198
    %v209 = vpack.c.bf16 %v204, %v200
    %v214 = vunpack.c.l.b16 %v206
    %v215 = vunpack.c.l.b16 %v207
    %v216 = vunpack.c.h.b16 %v206
    %v217 = vunpack.c.h.b16 %v207
    %v218 = vunpack.c.l.b16 %v208
    %v219 = vunpack.c.l.b16 %v209
    %v220 = vunpack.c.h.b16 %v208
    %v221 = vunpack.c.h.b16 %v209
    %v222 = vpack.c.b16 %v215, %v214
    %v223 = vpack.c.b16 %v217, %v216
    %v224 = vpack.c.b16 %v219, %v218
    %v225 = vpack.c.b16 %v221, %v220
    %230 = vst [vmem:[#allocation7] sm:$0xff] %v222
    %231 = vst [vmem:[#allocation7 + $0x8] sm:$0xff] %v223
    %232 = vst [vmem:[#allocation7 + $0x10] sm:$0xff] %v224
    %233 = vst [vmem:[#allocation7 + $0x18] sm:$0xff] %v225
    // Predicated region
    $region18: #{tpu_custom_call.1} parent=1 // pred_check
      _
    $region19: #{tpu_custom_call.1} parent=1 // pred_check_branch
      %235 = sbr.rel (0) target = $region21
    $region20: #{tpu_custom_call.1} parent=1 // pred_region
      %s237 = ssub.s32 512, 512
      %238 = vsyncadd [#allocation4], %s237
      %s239 = sshll.u32 [#allocation7], 4
      %s240 = int_to_ptr.vmem [resolvable:$true] %s239
      %245 = dma.vmem_to_hbm [thread:$0]  %s240, 512, %s2, [#allocation4], 128, 128, 8
    $region21: #{tpu_custom_call.1} parent=1 // pred_fallthru
      _
    // Predicated region
    $region22: #{tpu_custom_call.1} parent=1 // pred_check
      _
    $region23: #{tpu_custom_call.1} parent=1 // pred_check_branch
      %247 = sbr.rel (0) target = $region25
    $region24: #{tpu_custom_call.1} parent=1 // pred_region
      %248 = dma.done [#allocation4], 512
    $region25: #{tpu_custom_call.1} parent=1 // pred_fallthru
      _
    %249 = vsyncpa [#allocation3], 1
    %250 = vsyncpa [#allocation6], 1
    %251 = vsyncpa [#allocation4], 1

</llo_original>
